<compile_context>
chip_gen: v7x
topology: tpu7x:2x2x1
jax: 0.10.0
libtpu: 0.0.40
codegen_flags: <defaults>
</compile_context>

<pallas_src>
import math

import jax
import jax.numpy as jnp
from jax.experimental import pallas as pl
from jax.experimental.pallas import tpu as pltpu


# --------------------------------------------------------------------------
# Kernels
# --------------------------------------------------------------------------

def _fused_kernel(x_ref, w_ref, b_ref, o_ref):
    """Single-K-block case: o = cos(x @ W + b). No accumulator round-trip."""
    acc = jnp.dot(x_ref[...], w_ref[...], preferred_element_type=jnp.float32)
    o_ref[...] = jnp.cos(acc + b_ref[...]).astype(o_ref.dtype)


def _accum_kernel(x_ref, w_ref, b_ref, o_ref, acc_ref):
    """K-tiled fallback: f32 accumulator, bias + cos applied on the last K step."""
    k = pl.program_id(2)

    @pl.when(k == 0)
    def _():
        acc_ref[...] = jnp.zeros_like(acc_ref)

    acc_ref[...] += jnp.dot(x_ref[...], w_ref[...],
                            preferred_element_type=jnp.float32)

    @pl.when(k == pl.num_programs(2) - 1)
    def _():
        o_ref[...] = jnp.cos(acc_ref[...] + b_ref[...]).astype(o_ref.dtype)


# --------------------------------------------------------------------------
# Tiling helpers
# --------------------------------------------------------------------------

def _vmem_cap_bytes():
    # ~75% of physical VMEM: ~96 MiB on v5e/v6e (128 MiB), ~48 MiB on v7x (64 MiB).
    try:
        return int(0.75 * pltpu.get_tpu_info().vmem_capacity_bytes)
    except Exception:
        return 48 << 20  # safe on all generations


def _round_up(a, b):
    return pl.cdiv(a, b) * b


def _pick_tm(M, sub, tm_target):
    """Largest tile <= tm_target dividing M (no activation padding), else pad."""
    if M <= tm_target:
        return M, M                                  # full-dim block is always legal
    hi = (min(tm_target, M) // sub) * sub
    for c in range(hi, sub - 1, -sub):
        if M % c == 0:
            return c, M
    # TODO(synk): handle the last partial M tile in-kernel instead of padding x.
    tm = min(tm_target, _round_up(M, sub))
    return tm, _round_up(M, tm)


def _pick_tk(K):
    """Divisor of K that is a multiple of 128 (no K padding), else pad K."""
    for c in (2048, 1536, 1024, 768, 512, 384, 256, 128):
        if K % c == 0:
            return c, K
    return 1024, _round_up(K, 1024)


# --------------------------------------------------------------------------
# Wrapper
# --------------------------------------------------------------------------

def complex_exp_layer(x, frequency, bias=None, *, tm_target=512, max_full_k=2048):
    """Pallas TPU implementation of ComplexExpLayer.forward.

    Args:
      x:         (..., in_features) float32 or bfloat16
      frequency: (out_features, in_features) float32 (already scaled by omega)
      bias:      (out_features,) float32 or None
    Returns:
      (..., out_features), dtype of x.   forward(x) == cos(x @ F^T + b)
    """
    N, K = frequency.shape
    lead_shape = x.shape[:-1]
    M = math.prod(lead_shape) if lead_shape else 1
    x2 = x.reshape(M, K)

    out_dtype = x.dtype
    isz = x2.dtype.itemsize
    osz = jnp.dtype(out_dtype).itemsize
    sub = 16 if x.dtype == jnp.bfloat16 else 8

    # Weight: transpose ONCE to (K, N) so the kernel is a plain jnp.dot (no in-kernel
    # transpose); match bf16 activations with a bf16 weight (f32 accumulation kept).
    w_dtype = jnp.bfloat16 if x.dtype == jnp.bfloat16 else jnp.float32
    wT = frequency.T.astype(w_dtype)                       # (K, N)
    wsz = jnp.dtype(w_dtype).itemsize

    Np = _round_up(N, 128)                                 # lane-dense output stores
    if Np != N:
        wT = jnp.pad(wT, ((0, 0), (0, Np - N)))
    b_full = jnp.zeros((N,), jnp.float32) if bias is None else bias.astype(jnp.float32)
    b2 = jnp.pad(b_full, (0, Np - N)).reshape(1, Np)

    tm, Mp = _pick_tm(M, sub, tm_target)
    if Mp != M:
        x2 = jnp.pad(x2, ((0, Mp - M), (0, 0)))
    m_tiles = Mp // tm

    vmem_cap = _vmem_cap_bytes()

    if K <= max_full_k:
        # ------------- fused path: single K block, no accumulator -------------
        def fused_bytes(tn):
            return (2 * tm * K * isz            # x (double-buffered)
                    + 2 * K * tn * wsz          # weight
                    + 2 * 8 * tn * 4            # bias (sublane-padded)
                    + 2 * tm * tn * osz)        # output

        if m_tiles == 1 and Np >= 256:
            # Give both v7x TensorCores work even for tiny M (free on v5e/v6e).
            cands = [c for c in (Np // 2, 1024, 512, 256, 128)
                     if c % 128 == 0 and 0 < c < Np and Np % c == 0]
            cands.append(Np)
        else:
            # Prefer tn == Np: constant weight block index => weight DMA'd exactly once.
            cands = [Np] + [c for c in (2048, 1024, 512, 256, 128)
                            if c < Np and Np % c == 0]
        tn = next((c for c in cands if fused_bytes(c) <= vmem_cap), 128)
        n_tiles = Np // tn

        # Grid order: keep the larger operand resident across the inner axis.
        extra_w = (m_tiles - 1) * K * Np * wsz if n_tiles > 1 else 0
        extra_x = (n_tiles - 1) * Mp * K * isz if m_tiles > 1 else 0
        if n_tiles > 1 and m_tiles > 1 and extra_w > extra_x:
            grid = (n_tiles, m_tiles)                      # N-tile outer, M-tile inner
            x_spec = pl.BlockSpec((tm, K), lambda j, i: (i, 0))
            w_spec = pl.BlockSpec((K, tn), lambda j, i: (0, j))
            b_spec = pl.BlockSpec((1, tn), lambda j, i: (0, j))
            o_spec = pl.BlockSpec((tm, tn), lambda j, i: (i, j))
            weight_reads, x_reads = 1, n_tiles
        else:
            grid = (m_tiles, n_tiles)                      # M-tile outer, N-tile inner
            x_spec = pl.BlockSpec((tm, K), lambda i, j: (i, 0))
            w_spec = pl.BlockSpec((K, tn), lambda i, j: (0, j))
            b_spec = pl.BlockSpec((1, tn), lambda i, j: (0, j))
            o_spec = pl.BlockSpec((tm, tn), lambda i, j: (i, j))
            weight_reads, x_reads = (m_tiles if n_tiles > 1 else 1), 1

        needed = fused_bytes(tn)
        cost = pl.CostEstimate(
            flops=2 * Mp * K * Np,
            transcendentals=Mp * Np,
            bytes_accessed=(x_reads * Mp * K * isz
                            + weight_reads * K * Np * wsz
                            + Np * 4 + Mp * Np * osz))

        out = pl.pallas_call(
            _fused_kernel,
            out_shape=jax.ShapeDtypeStruct((Mp, Np), out_dtype),
            grid_spec=pltpu.PrefetchScalarGridSpec(
                num_scalar_prefetch=0,
                grid=grid,
                in_specs=[x_spec, w_spec, b_spec],
                out_specs=o_spec),
            compiler_params=pltpu.CompilerParams(
                dimension_semantics=("parallel", "parallel"),
                vmem_limit_bytes=int(min(max(needed * 5 // 4, 16 << 20), vmem_cap))),
            cost_estimate=cost,
        )(x2, wT, b2)

    else:
        # ------------- K-tiled fallback: f32 VMEM accumulator ------------------
        tk, Kp = _pick_tk(K)
        if Kp != K:
            x2 = jnp.pad(x2, ((0, 0), (0, Kp - K)))
            wT = jnp.pad(wT, ((0, Kp - K), (0, 0)))
        k_tiles = Kp // tk

        def accum_bytes(tn):
            return (2 * tm * tk * isz + 2 * tk * tn * wsz + 2 * 8 * tn * 4
                    + 2 * tm * tn * osz + tm * tn * 4)

        cands = [c for c in (1024, 512, 256, 128) if Np % c == 0] or [128]
        tn = next((c for c in cands if accum_bytes(c) <= vmem_cap), 128)
        n_tiles = Np // tn
        needed = accum_bytes(tn)

        cost = pl.CostEstimate(
            flops=2 * Mp * Kp * Np,
            transcendentals=Mp * Np,
            bytes_accessed=(Mp * Kp * isz + m_tiles * Kp * Np * wsz
                            + Np * 4 + Mp * Np * osz))

        out = pl.pallas_call(
            _accum_kernel,
            out_shape=jax.ShapeDtypeStruct((Mp, Np), out_dtype),
            grid_spec=pltpu.PrefetchScalarGridSpec(
                num_scalar_prefetch=0,
                grid=(m_tiles, n_tiles, k_tiles),
                in_specs=[
                    pl.BlockSpec((tm, tk), lambda i, j, k: (i, k)),   # x
                    pl.BlockSpec((tk, tn), lambda i, j, k: (k, j)),   # W^T (K, N)
                    pl.BlockSpec((1, tn), lambda i, j, k: (0, j)),    # bias
                ],
                out_specs=pl.BlockSpec((tm, tn), lambda i, j, k: (i, j)),
                scratch_shapes=[pltpu.VMEM((tm, tn), jnp.float32)]),
            compiler_params=pltpu.CompilerParams(
                dimension_semantics=("parallel", "parallel", "arbitrary"),
                vmem_limit_bytes=int(min(max(needed * 5 // 4, 16 << 20), vmem_cap))),
            cost_estimate=cost,
        )(x2, wT, b2)

    out = out[:M, :N]
    return out.reshape(*lead_shape, N)


# --------------------------------------------------------------------------
# Parameter init mirroring the PyTorch module
# --------------------------------------------------------------------------

def init_params(key, in_features, out_features, omega=30.0):
    """SirenUniformInitializer: U(-sqrt(6/fan_in)/omega, +)/omega scaled by omega;
    bias ~ U(-1/sqrt(fan_in), 1/sqrt(fan_in))."""
    kf, kb = jax.random.split(key)
    w_bound = math.sqrt(6.0 / in_features)
    frequency = jax.random.uniform(
        kf, (out_features, in_features), jnp.float32, -w_bound, w_bound)
    b_bound = 1.0 / math.sqrt(in_features)
    bias = jax.random.uniform(
        kb, (out_features,), jnp.float32, -b_bound, b_bound)
    return frequency, bias


if __name__ == "__main__":
    key = jax.random.PRNGKey(0)
    k_x, k_p = jax.random.split(key)

    in_features, out_features = 32, 64
    batch, seq = 2, 8
    x = jax.random.normal(k_x, (batch, seq, in_features), jnp.float32)

    frequency, bias = init_params(k_p, in_features, out_features)

    out = complex_exp_layer(x, frequency, bias)
    out = jax.block_until_ready(out)

    # Reference (pure JAX): exp(1j*(x@F^T + b)).real == cos(x@F^T + b)
    ref = jnp.cos(jnp.einsum("bsk,nk->bsn", x, frequency) + bias)
    assert out.shape == (batch, seq, out_features)
    assert jnp.allclose(out, ref, atol=5e-4, rtol=5e-4)

    print("KERNEL_OK")
</pallas_src>

<mosaic_0001>
module attributes {stable_mosaic.version = 11 : i64} {
  func.func @_fused_kernel(%arg0: i32, %arg1: i32, %arg2: memref<16x32xf32, #tpu.memory_space<vmem>>, %arg3: memref<32x128xf32, #tpu.memory_space<vmem>>, %arg4: memref<1x128xf32, #tpu.memory_space<vmem>>, %arg5: memref<16x128xf32, #tpu.memory_space<vmem>>) attributes {dimension_semantics = [#tpu.dimension_semantics<parallel>, #tpu.dimension_semantics<parallel>], iteration_bounds = array<i64: 1, 1>, scalar_prefetch = 0 : i64, scratch_operands = 0 : i64, tpu.core_type = #tpu.core_type<tc>, window_params = [{transform_indices = @transform_0, window_bounds = array<i64: 16, 32>}, {transform_indices = @transform_1, window_bounds = array<i64: 32, 128>}, {transform_indices = @transform_2, window_bounds = array<i64: 1, 128>}, {transform_indices = @transform_3, window_bounds = array<i64: 16, 128>}]} {
    %c0 = arith.constant 0 : index
    %c0_0 = arith.constant 0 : index
    %0 = vector.load %arg2[%c0, %c0_0] : memref<16x32xf32, #tpu.memory_space<vmem>>, vector<16x32xf32>
    %c0_1 = arith.constant 0 : index
    %c0_2 = arith.constant 0 : index
    %1 = vector.load %arg3[%c0_1, %c0_2] : memref<32x128xf32, #tpu.memory_space<vmem>>, vector<32x128xf32>
    %cst = arith.constant dense<0.000000e+00> : vector<16x128xf32>
    %2 = tpu.matmul %0, %1, %cst {dimension_numbers = #tpu.dot_dimension_numbers<[1], [0], [0], [1], [0, 0, 1, 1], [], []>} : vector<16x32xf32>, vector<32x128xf32>, vector<16x128xf32> -> vector<16x128xf32>
    %c0_3 = arith.constant 0 : index
    %c0_4 = arith.constant 0 : index
    %3 = vector.load %arg4[%c0_3, %c0_4] : memref<1x128xf32, #tpu.memory_space<vmem>>, vector<1x128xf32>
    %4 = vector.broadcast %3 : vector<1x128xf32> to vector<16x128xf32>
    %5 = arith.addf %2, %4 : vector<16x128xf32>
    %6 = math.cos %5 : vector<16x128xf32>
    %c0_5 = arith.constant 0 : index
    %c0_6 = arith.constant 0 : index
    %7 = vector.load %arg5[%c0_5, %c0_6] : memref<16x128xf32, #tpu.memory_space<vmem>>, vector<16x128xf32>
    tpu.vector_store %arg5[%c0_5, %c0_6], %6 {strides = array<i32>} : memref<16x128xf32, #tpu.memory_space<vmem>>, vector<16x128xf32>,
    return
  }
  func.func @transform_0(%arg0: i32, %arg1: i32) -> (i32, i32) {
    %c0_i32 = arith.constant 0 : i32
    %c0_i32_0 = arith.constant 0 : i32
    return %arg0, %c0_i32 : i32, i32
  }
  func.func @transform_1(%arg0: i32, %arg1: i32) -> (i32, i32) {
    %c0_i32 = arith.constant 0 : i32
    %c0_i32_0 = arith.constant 0 : i32
    return %c0_i32, %arg1 : i32, i32
  }
  func.func @transform_2(%arg0: i32, %arg1: i32) -> (i32, i32) {
    %c0_i32 = arith.constant 0 : i32
    %c0_i32_0 = arith.constant 0 : i32
    return %c0_i32, %arg1 : i32, i32
  }
  func.func @transform_3(%arg0: i32, %arg1: i32) -> (i32, i32) {
    %c0_i32 = arith.constant 0 : i32
    return %arg0, %arg1 : i32, i32
  }
}

</mosaic_0001>

<llo_original>
// kernel: tpu_custom_call.1
$region0: #{tpu_custom_call.1}
  #allocation0 [shape = 'u32[]', space=smem, size = 0x4, offset = 0x4, fixed_abs, tag = 'smem constant byte address 0x4 - core index']
  #allocation1 [shape = 'u32[144,128]{1,0:T(1,128)}', space=vmem, size = 0x12000, scoped, tag = 'internal scratch']
  %s0 = inlined_call_operand.hbm [shape: f32[16,32], index: 0, kind: input, shape index: {}]
  %s1 = inlined_call_operand.hbm [shape: f32[32,128], index: 1, kind: input, shape index: {}]
  %s2 = inlined_call_operand.vmem [shape: f32[1,128], index: 2, kind: input, shape index: {}]
  %s3 = inlined_call_operand.hbm [shape: f32[16,128], index: 3, kind: output, shape index: {}]
  %s4 = sld [smem:[#allocation0]]
  $region30: #{tpu_custom_call.1} parent=0
    _
  %s6 = ssub.s32 1, %s4
  %s7 = scalar_select 0, %s6, %s4
  $region1: #{tpu_custom_call.1} parent=0
    #allocation2 [shape = 'u8[8192]{0}', space=vmem, size = 0x2000, scoped, tag = 'input window, operand 0, single buffered']
    #allocation3 [shape = 's32[1]{0}', space=sflag, size = 0x4, scoped, tag = 'scoped memory for tpu_custom_call.1']
    #allocation4 [shape = 's32[1]{0}', space=sflag, size = 0x4, scoped, tag = 'scoped memory for tpu_custom_call.1']
    #allocation5 [shape = 'u8[16384]{0}', space=vmem, size = 0x4000, scoped, tag = 'input window, operand 1, single buffered']
    #allocation6 [shape = 's32[1]{0}', space=sflag, size = 0x4, scoped, tag = 'scoped memory for tpu_custom_call.1']
    #allocation7 [shape = 'u8[8192]{0}', space=vmem, size = 0x2000, scoped, tag = 'output window, operand 0, single buffered']
    %8 = vsyncpa [#allocation3], 0
    %9 = vsyncpa [#allocation6], 0
    %10 = vsyncpa [#allocation4], 0
    // Predicated region
    $region2: #{tpu_custom_call.1} parent=1 // pred_check
      _
    $region3: #{tpu_custom_call.1} parent=1 // pred_check_branch
      %12 = sbr.rel (0) target = $region5
    $region4: #{tpu_custom_call.1} parent=1 // pred_region
      %s14 = ssub.s32 256, 256
      %15 = vsyncadd [#allocation3], %s14
      %s16 = sshll.u32 [#allocation2], 4
      %s17 = int_to_ptr.vmem [resolvable:$true] %s16
      %22 = dma.hbm_to_vmem [thread:$0]  %s0, 256, %s17, [#allocation3], 128, 128, 8
    $region5: #{tpu_custom_call.1} parent=1 // pred_fallthru
      _
    // Predicated region
    $region6: #{tpu_custom_call.1} parent=1 // pred_check
      _
    $region7: #{tpu_custom_call.1} parent=1 // pred_check_branch
      %24 = sbr.rel (0) target = $region9
    $region8: #{tpu_custom_call.1} parent=1 // pred_region
      %s26 = ssub.s32 512, 512
      %27 = vsyncadd [#allocation6], %s26
      %s28 = sshll.u32 [#allocation5], 4
      %s29 = int_to_ptr.vmem [resolvable:$true] %s28
      %34 = dma.hbm_to_vmem [thread:$0]  %s1, 512, %s29, [#allocation6], 128, 128, 8
    $region9: #{tpu_custom_call.1} parent=1 // pred_fallthru
      _
    // Predicated region
    $region10: #{tpu_custom_call.1} parent=1 // pred_check
      _
    $region11: #{tpu_custom_call.1} parent=1 // pred_check_branch
      %36 = sbr.rel (0) target = $region13
    $region12: #{tpu_custom_call.1} parent=1 // pred_region
      _
    $region13: #{tpu_custom_call.1} parent=1 // pred_fallthru
      _
    // Predicated region
    $region14: #{tpu_custom_call.1} parent=1 // pred_check
      _
    $region15: #{tpu_custom_call.1} parent=1 // pred_check_branch
      %38 = sbr.rel (0) target = $region17
    $region16: #{tpu_custom_call.1} parent=1 // pred_region
      %39 = dma.done [#allocation3], 256
    $region17: #{tpu_custom_call.1} parent=1 // pred_fallthru
      _
    // Predicated region
    $region18: #{tpu_custom_call.1} parent=1 // pred_check
      _
    $region19: #{tpu_custom_call.1} parent=1 // pred_check_branch
      %41 = sbr.rel (0) target = $region21
    $region20: #{tpu_custom_call.1} parent=1 // pred_region
      %42 = dma.done [#allocation6], 512
    $region21: #{tpu_custom_call.1} parent=1 // pred_fallthru
      _
    %v43 = vld [vmem:[#allocation2] sm:$0xff]
    %v44 = vld [vmem:[#allocation2 + $0x8] sm:$0xff]
    %v45 = vld [vmem:[#allocation5] sm:$0xff]
    %v46 = vld [vmem:[#allocation5 + $0x8] sm:$0xff]
    %v47 = vld [vmem:[#allocation5 + $0x10] sm:$0xff]
    %v48 = vld [vmem:[#allocation5 + $0x18] sm:$0xff]
    %v49 = vld [vmem:[%s2] sm:$0x1]
    %v51 = vlaneseq
    %v52 = vshrl.u32 %v51, 7
    %v53 = vsub.s32 0, %v52
    %v54 = vrot.slane %v49, %v53
    %vm56 = vcmask 261120
    %v58 = vsel %vm56, %v43, 0
    %v61 = vsel %vm56, %v44, 0
    %63 = vmatprep.subr.mxu0 0.0
    %64 = vmatpush1.msra.mxu0 %v45
    %65 = vmatprep.subr.mxu0 0.0
    %66 = vmatpush1.msra.mxu0 %v46
    %67 = vmatprep.subr.mxu0 0.0
    %68 = vmatpush1.msra.mxu0 %v47
    %69 = vmatprep.subr.mxu0 0.0
    %70 = vmatpush1.msra.mxu0 %v48
    %71 = vmatprep.subr.mxu0 0.0
    %72 = vmatpush1.msra.mxu0 0.0
    %73 = vmatprep.subr.mxu0 0.0
    %74 = vmatpush1.msra.mxu0 0.0
    %75 = vmatprep.subr.mxu0 0.0
    %76 = vmatpush1.msra.mxu0 0.0
    %77 = vmatprep.subr.mxu0 0.0
    %78 = vmatpush1.msra.mxu0 0.0
    %79 = vmatprep.subr.mxu0 0.0
    %80 = vmatpush1.msra.mxu0 0.0
    %81 = vmatprep.subr.mxu0 0.0
    %82 = vmatpush1.msra.mxu0 0.0
    %83 = vmatprep.subr.mxu0 0.0
    %84 = vmatpush1.msra.mxu0 0.0
    %85 = vmatprep.subr.mxu0 0.0
    %86 = vmatpush1.msra.mxu0 0.0
    %87 = vmatprep.subr.mxu0 0.0
    %88 = vmatpush1.msra.mxu0 0.0
    %89 = vmatprep.subr.mxu0 0.0
    %90 = vmatpush1.msra.mxu0 0.0
    %91 = vmatprep.subr.mxu0 0.0
    %92 = vmatpush1.msra.mxu0 0.0
    %93 = vmatprep.subr.mxu0 0.0
    %94 = vmatpush1.msra.mxu0 0.0
    %95 = vmatprep.subr.mxu0 0.0
    %96 = vmatpush1.msra.mxu0 0.0
    %97 = vmatprep.subr.mxu0 0.0
    %98 = vmatpush1.msra.mxu0 0.0
    %99 = vmatprep.subr.mxu0 0.0
    %100 = vmatpush1.msra.mxu0 0.0
    %101 = vmatprep.subr.mxu0 0.0
    %102 = vmatpush1.msra.mxu0 0.0
    %103 = vmatprep.subr.mxu0 0.0
    %104 = vmatpush1.msra.mxu0 0.0
    %105 = vmatprep.subr.mxu0 0.0
    %106 = vmatpush1.msra.mxu0 0.0
    %107 = vmatprep.subr.mxu0 0.0
    %108 = vmatpush1.msra.mxu0 0.0
    %109 = vmatprep.subr.mxu0 0.0
    %110 = vmatpush1.msra.mxu0 0.0
    %111 = vmatprep.subr.mxu0 0.0
    %112 = vmatpush1.msra.mxu0 0.0
    %113 = vmatprep.subr.mxu0 0.0
    %114 = vmatpush1.msra.mxu0 0.0
    %115 = vmatprep.subr.mxu0 0.0
    %116 = vmatpush1.msra.mxu0 0.0
    %117 = vmatprep.subr.mxu0 0.0
    %118 = vmatpush1.msra.mxu0 0.0
    %119 = vmatprep.subr.mxu0 0.0
    %120 = vmatpush1.msra.mxu0 0.0
    %121 = vmatprep.subr.mxu0 0.0
    %122 = vmatpush1.msra.mxu0 0.0
    %123 = vmatprep.subr.mxu0 0.0
    %124 = vmatpush1.msra.mxu0 0.0
    %125 = vmatprep.subr.mxu0 0.0
    %126 = vmatpush1.msra.mxu0 0.0
    %127 = vmatprep.mubr.f32.mxu0 0.0
    %128 = vmatmul.mubr.f32.gmra.mrb[0].mxu0 %v58
    %v129 = vpop.f32.mrb[0].mxu0
    %v130 = vadd.f32 %v54, %v129
    %v131 = vpop.f32.mrb[0].mxu0
    %132 = vmatprep.mubr.f32.mxu0 0.0
    %133 = vmatmul.mubr.f32.gmra.mrb[0].mxu0 %v61
    %v134 = vpop.f32.mrb[0].mxu0
    %v135 = vadd.f32 %v54, %v134
    %v136 = vpop.f32.mrb[0].mxu0
    %137 = vdwg.mxu0
    %v138 = vand.u32 2147483647, %v130
    %vm139 = vcmp.le.f32.partialorder %v138, 0.7853982
    %vm140 = vcmp.lt.s32.totalorder %v130, 0
    %v141 = vand.u32 %v130, 2139095040
    %v142 = vshrl.u32 %v141, 23
    %v143 = vsub.s32 %v142, 127
    %v144 = vand.u32 2147483647, %v130
    %v145 = vand.u32 %v144, 8388607
    %v146 = vor.u32 %v145, 8388608
    %v147 = vsub.s32 0, %v146
    %v148 = vadd.s32 %v143, 1
    %vm149 = vcmp.gt.s32.totalorder %v148, 0
    %v150 = vsel %vm149, %v148, 0
    %v151 = vshrl.u32 %v150, 5
    %v152 = vand.u32 %v150, 31
    %v153 = vsub.s32 32, %v152
    %v154 = vshrl.u32 683565275, %v153
    %v155 = vshll.u32 683565275, %v152
    %v156 = vshrl.u32 2475754826, %v153
    %v157 = vor.u32 %v155, %v156
    %v158 = vshll.u32 2475754826, %v152
    %v159 = vshrl.u32 2131351028, %v153
    %v160 = vor.u32 %v158, %v159
    %v161 = vshll.u32 2131351028, %v152
    %v162 = vshrl.u32 2102212464, %v153
    %v163 = vor.u32 %v161, %v162
    %v164 = vshll.u32 2102212464, %v152
    %v165 = vshrl.u32 920167782, %v153
    %v166 = vor.u32 %v164, %v165
    %v167 = vshll.u32 920167782, %v152
    %v168 = vshrl.u32 1326507024, %v153
    %v169 = vor.u32 %v167, %v168
    %vm170 = vcmp.lt.s32.totalorder %v151, 1
    %vm171 = vcmp.lt.s32.totalorder %v151, 2
    %vm172 = vcmp.lt.s32.totalorder %v151, 3
    %vm173 = vcmp.lt.s32.totalorder %v151, 4
    %v174 = vsel %vm170, %v154, %v157
    %v175 = vsel %vm173, %v163, 2102212464
    %v176 = vsel %vm172, %v160, %v175
    %v177 = vsel %vm171, %v174, %v176
    %v178 = vsel %vm170, %v157, %v160
    %v179 = vsel %vm173, %v166, 920167782
    %v180 = vsel %vm172, %v163, %v179
    %v181 = vsel %vm171, %v178, %v180
    %v182 = vsel %vm170, %v160, %v163
    %v183 = vsel %vm173, %v169, 1326507024
    %v184 = vsel %vm172, %v166, %v183
    %v185 = vsel %vm171, %v182, %v184
    %v186 = vshll.u32 %v146, 8
    %v187 = vmul.u32.u64.compose %v186, %v185
    %v188 = vextract.low.u32 %v187
    %v189 = vextract.high.u32 %v187
    %v190 = vmul.u32.u64.compose %v186, %v181
    %v191 = vextract.low.u32 %v190
    %v192 = vextract.high.u32 %v190
    %v193 = vmul.u32 %v186, %v177
    %v194 = vadd.s32 %v189, %v191
    %vm195 = vc.u32 %v189, %v191
    %v196 = vadd.s32 %v192, 1
    %v197 = vsel %vm195, %v196, %v192
    %v198 = vadd.s32 %v193, %v197
    %v199 = vadd.s32 %v198, 536870912
    %v200 = vshrl.u32 %v199, 30
    %v201 = vshll.u32 %v200, 30
    %v202 = vsub.s32 %v198, %v201
    %vm203 = vcmp.lt.s32.totalorder %v202, 0
    %v204 = vsub.s32 0, %v202
    %v205 = vsel %vm203, %v204, %v202
    %v206 = vclz %v205
    %v207 = vsub.s32 %v206, 2
    %vm208 = vcmp.gt.s32.totalorder 0, %v207
    %v209 = vsel %vm208, 0, %v207
    %v210 = vsub.s32 32, %v209
    %v211 = vshll.u32 %v202, %v209
    %v212 = vshrl.u32 %v194, %v210
    %v213 = vor.u32 %v211, %v212
    %v214 = vsub.s32 4294967266, %v209
    %v215 = vadd.s32 %v214, 127
    %v216 = vshll.u32 %v215, 23
    %v217 = vor.u32 4788187, %v216
    %v218 = vand.u32 2147483647, %v217
    %v220 = vcvt.s32.f32 %v213
    %v221 = vmul.f32 %v220, %v218
    %v222 = vxor.u32 %v221, 2147483648
    %v223 = vsel %vm140, %v222, %v221
    %v224 = vsub.s32 4, %v200
    %v225 = vsel %vm140, %v224, %v200
    %v226 = vsel %vm139, %v130, %v223
    %v227 = vsel %vm139, 0, %v225
    %v228 = vcosq.f32.pop %v226
    %v229 = vsinq.f32.pop %v226
    %vm230 = vweird.f32 %v130
    %v231 = vand.u32 %v227, 3
    %vm232 = vcmp.lt.s32.totalorder %v231, 2
    %vm233 = vcmp.eq.s32.totalorder %v231, 0
    %v234 = vxor.u32 %v229, 2147483648
    %v235 = vsel %vm233, %v228, %v234
    %vm236 = vcmp.eq.s32.totalorder %v231, 2
    %v237 = vxor.u32 %v228, 2147483648
    %v238 = vsel %vm236, %v237, %v229
    %v239 = vsel %vm232, %v235, %v238
    %v240 = vsel %vm230, nan, %v239
    %v241 = vand.u32 2147483647, %v135
    %vm242 = vcmp.le.f32.partialorder %v241, 0.7853982
    %vm243 = vcmp.lt.s32.totalorder %v135, 0
    %v244 = vand.u32 %v135, 2139095040
    %v245 = vshrl.u32 %v244, 23
    %v246 = vsub.s32 %v245, 127
    %v247 = vand.u32 2147483647, %v135
    %v248 = vand.u32 %v247, 8388607
    %v249 = vor.u32 %v248, 8388608
    %v250 = vsub.s32 0, %v249
    %v251 = vadd.s32 %v246, 1
    %vm252 = vcmp.gt.s32.totalorder %v251, 0
    %v253 = vsel %vm252, %v251, 0
    %v254 = vshrl.u32 %v253, 5
    %v255 = vand.u32 %v253, 31
    %v256 = vsub.s32 32, %v255
    %v257 = vshrl.u32 683565275, %v256
    %v258 = vshll.u32 683565275, %v255
    %v259 = vshrl.u32 2475754826, %v256
    %v260 = vor.u32 %v258, %v259
    %v261 = vshll.u32 2475754826, %v255
    %v262 = vshrl.u32 2131351028, %v256
    %v263 = vor.u32 %v261, %v262
    %v264 = vshll.u32 2131351028, %v255
    %v265 = vshrl.u32 2102212464, %v256
    %v266 = vor.u32 %v264, %v265
    %v267 = vshll.u32 2102212464, %v255
    %v268 = vshrl.u32 920167782, %v256
    %v269 = vor.u32 %v267, %v268
    %v270 = vshll.u32 920167782, %v255
    %v271 = vshrl.u32 1326507024, %v256
    %v272 = vor.u32 %v270, %v271
    %vm273 = vcmp.lt.s32.totalorder %v254, 1
    %vm274 = vcmp.lt.s32.totalorder %v254, 2
    %vm275 = vcmp.lt.s32.totalorder %v254, 3
    %vm276 = vcmp.lt.s32.totalorder %v254, 4
    %v277 = vsel %vm273, %v257, %v260
    %v278 = vsel %vm276, %v266, 2102212464
    %v279 = vsel %vm275, %v263, %v278
    %v280 = vsel %vm274, %v277, %v279
    %v281 = vsel %vm273, %v260, %v263
    %v282 = vsel %vm276, %v269, 920167782
    %v283 = vsel %vm275, %v266, %v282
    %v284 = vsel %vm274, %v281, %v283
    %v285 = vsel %vm273, %v263, %v266
    %v286 = vsel %vm276, %v272, 1326507024
    %v287 = vsel %vm275, %v269, %v286
    %v288 = vsel %vm274, %v285, %v287
    %v289 = vshll.u32 %v249, 8
    %v290 = vmul.u32.u64.compose %v289, %v288
    %v291 = vextract.low.u32 %v290
    %v292 = vextract.high.u32 %v290
    %v293 = vmul.u32.u64.compose %v289, %v284
    %v294 = vextract.low.u32 %v293
    %v295 = vextract.high.u32 %v293
    %v296 = vmul.u32 %v289, %v280
    %v297 = vadd.s32 %v292, %v294
    %vm298 = vc.u32 %v292, %v294
    %v299 = vadd.s32 %v295, 1
    %v300 = vsel %vm298, %v299, %v295
    %v301 = vadd.s32 %v296, %v300
    %v302 = vadd.s32 %v301, 536870912
    %v303 = vshrl.u32 %v302, 30
    %v304 = vshll.u32 %v303, 30
    %v305 = vsub.s32 %v301, %v304
    %vm306 = vcmp.lt.s32.totalorder %v305, 0
    %v307 = vsub.s32 0, %v305
    %v308 = vsel %vm306, %v307, %v305
    %v309 = vclz %v308
    %v310 = vsub.s32 %v309, 2
    %vm311 = vcmp.gt.s32.totalorder 0, %v310
    %v312 = vsel %vm311, 0, %v310
    %v313 = vsub.s32 32, %v312
    %v314 = vshll.u32 %v305, %v312
    %v315 = vshrl.u32 %v297, %v313
    %v316 = vor.u32 %v314, %v315
    %v317 = vsub.s32 4294967266, %v312
    %v318 = vadd.s32 %v317, 127
    %v319 = vshll.u32 %v318, 23
    %v320 = vor.u32 4788187, %v319
    %v321 = vand.u32 2147483647, %v320
    %v323 = vcvt.s32.f32 %v316
    %v324 = vmul.f32 %v323, %v321
    %v325 = vxor.u32 %v324, 2147483648
    %v326 = vsel %vm243, %v325, %v324
    %v327 = vsub.s32 4, %v303
    %v328 = vsel %vm243, %v327, %v303
    %v329 = vsel %vm242, %v135, %v326
    %v330 = vsel %vm242, 0, %v328
    %v331 = vcosq.f32.pop %v329
    %v332 = vsinq.f32.pop %v329
    %vm333 = vweird.f32 %v135
    %v334 = vand.u32 %v330, 3
    %vm335 = vcmp.lt.s32.totalorder %v334, 2
    %vm336 = vcmp.eq.s32.totalorder %v334, 0
    %v337 = vxor.u32 %v332, 2147483648
    %v338 = vsel %vm336, %v331, %v337
    %vm339 = vcmp.eq.s32.totalorder %v334, 2
    %v340 = vxor.u32 %v331, 2147483648
    %v341 = vsel %vm339, %v340, %v332
    %v342 = vsel %vm335, %v338, %v341
    %v343 = vsel %vm333, nan, %v342
    %344 = vst [vmem:[#allocation7] sm:$0xff] %v240
    %345 = vst [vmem:[#allocation7 + $0x8] sm:$0xff] %v343
    // Predicated region
    $region22: #{tpu_custom_call.1} parent=1 // pred_check
      _
    $region23: #{tpu_custom_call.1} parent=1 // pred_check_branch
      %347 = sbr.rel (0) target = $region25
    $region24: #{tpu_custom_call.1} parent=1 // pred_region
      %s349 = ssub.s32 256, 256
      %350 = vsyncadd [#allocation4], %s349
      %s351 = sshll.u32 [#allocation7], 4
      %s352 = int_to_ptr.vmem [resolvable:$true] %s351
      %357 = dma.vmem_to_hbm [thread:$0]  %s352, 256, %s3, [#allocation4], 128, 128, 8
    $region25: #{tpu_custom_call.1} parent=1 // pred_fallthru
      _
    // Predicated region
    $region26: #{tpu_custom_call.1} parent=1 // pred_check
      _
    $region27: #{tpu_custom_call.1} parent=1 // pred_check_branch
      %359 = sbr.rel (0) target = $region29
    $region28: #{tpu_custom_call.1} parent=1 // pred_region
      %360 = dma.done [#allocation4], 256
    $region29: #{tpu_custom_call.1} parent=1 // pred_fallthru
      _
    %361 = vsyncpa [#allocation3], 1
    %362 = vsyncpa [#allocation6], 1
    %363 = vsyncpa [#allocation4], 1

</llo_original>
